<compile_context>
chip_gen: v5e
topology: v5e:2x2
jax: 0.10.0
libtpu: 0.0.40
codegen_flags: <defaults>
</compile_context>

<pallas_src>
import functools

import jax
import jax.numpy as jnp
from jax.experimental import pallas as pl
from jax.experimental.pallas import tpu as pltpu

_HID = 64                 # hidden width of each individual MLP (nn.Linear(., 64))
_SINGLE_F = 2 * _HID      # fused width for one actor + critic  (=128)
_JOINT_F = 256            # fused width actor1|actor2|critic|pad (256-wide MXU)


# ---------------------------------------------------------------------------
# Kernels
# ---------------------------------------------------------------------------
def _eval_kernel(state_ref, action_ref, dist_ref,
                 w1_ref, b1_ref, w2_ref, b2_ref, w3_ref, b3_ref,
                 out_ref, *, action_dim):
    """Fused (actor_i + critic) forward for one batch tile.

    dist_ref: [1, A+1] = [1/var_0 .. 1/var_{A-1}, logprob_const]  (f32)
    out_ref:  [TM, 2]  = [log_prob, state_value]                  (f32)
    """
    A = action_dim
    cd = w1_ref.dtype                                    # MXU operand dtype
    x = state_ref[...].astype(cd)                                    # [TM, 2S]
    h = jnp.tanh(jnp.dot(x, w1_ref[...],
                         preferred_element_type=jnp.float32) + b1_ref[...])
    h = jnp.tanh(jnp.dot(h.astype(cd), w2_ref[...],
                         preferred_element_type=jnp.float32) + b2_ref[...])
    o = jnp.dot(h.astype(cd), w3_ref[...],
                preferred_element_type=jnp.float32) + b3_ref[...]    # [TM, A+1]

    inv_var = dist_ref[:, :A]                                        # [1, A]
    lp_const = dist_ref[:, A:A + 1]                                  # [1, 1]
    diff = action_ref[...] - o[:, :A]                                # [TM, A]
    quad = jnp.sum(diff * diff * inv_var, axis=-1, keepdims=True)    # [TM, 1]

    logprob = lp_const - 0.5 * quad
    value = o[:, A:A + 1]
    out_ref[...] = jnp.concatenate([logprob, value], axis=1)         # one store


def _joint_kernel(state_ref, act1_ref, act2_ref, dist_ref,
                  w1_ref, b1_ref, w2_ref, b2_ref, w3_ref, b3_ref,
                  out_ref, *, action_dim):
    """Fused evaluate1 + evaluate2: both actor heads + ONE shared critic pass.

    Hidden fused width padded to 256 (actor1 | actor2 | critic | zeros).
    out_ref: [TM, 3] = [log_prob1, log_prob2, state_value]
    """
    A = action_dim
    cd = w1_ref.dtype
    x = state_ref[...].astype(cd)
    h = jnp.tanh(jnp.dot(x, w1_ref[...],
                         preferred_element_type=jnp.float32) + b1_ref[...])
    h = jnp.tanh(jnp.dot(h.astype(cd), w2_ref[...],
                         preferred_element_type=jnp.float32) + b2_ref[...])
    o = jnp.dot(h.astype(cd), w3_ref[...],
                preferred_element_type=jnp.float32) + b3_ref[...]    # [TM, 2A+1]

    inv_var = dist_ref[:, :A]
    lp_const = dist_ref[:, A:A + 1]
    d1 = act1_ref[...] - o[:, :A]
    d2 = act2_ref[...] - o[:, A:2 * A]
    q1 = jnp.sum(d1 * d1 * inv_var, axis=-1, keepdims=True)
    q2 = jnp.sum(d2 * d2 * inv_var, axis=-1, keepdims=True)

    lp1 = lp_const - 0.5 * q1
    lp2 = lp_const - 0.5 * q2
    value = o[:, 2 * A:2 * A + 1]
    out_ref[...] = jnp.concatenate([lp1, lp2, value], axis=1)


# ---------------------------------------------------------------------------
# Parameter construction & offline weight fusion
# ---------------------------------------------------------------------------
def _linear_params(key, in_dim, out_dim):
    """PyTorch-like init: U(-1/sqrt(in), 1/sqrt(in)); weights stored [in, out]
    (transpose of nn.Linear.weight) so kernels do x @ W + b on the MXU."""
    kw, kb = jax.random.split(key)
    bound = 1.0 / jnp.sqrt(jnp.float32(in_dim))
    w = jax.random.uniform(kw, (in_dim, out_dim), jnp.float32, -bound, bound)
    b = jax.random.uniform(kb, (1, out_dim), jnp.float32, -bound, bound)
    return w, b


def _fuse_single(p, which, state_dim, action_dim, compute_dtype):
    """Pack actor_{which} + critic into three 128-lane-wide matmul operands."""
    S, A, H = state_dim, action_dim, _HID
    pre = "a1" if which == 1 else "a2"
    row0 = 0 if which == 1 else S

    w1 = jnp.zeros((2 * S, _SINGLE_F), jnp.float32)
    w1 = w1.at[row0:row0 + S, 0:H].set(p[f"{pre}_w1"])   # actor sees its half
    w1 = w1.at[:, H:2 * H].set(p["c_w1"])                # critic sees full state
    b1 = jnp.concatenate([p[f"{pre}_b1"], p["c_b1"]], axis=1)

    w2 = jnp.zeros((_SINGLE_F, _SINGLE_F), jnp.float32)
    w2 = w2.at[0:H, 0:H].set(p[f"{pre}_w2"])
    w2 = w2.at[H:, H:].set(p["c_w2"])
    b2 = jnp.concatenate([p[f"{pre}_b2"], p["c_b2"]], axis=1)

    w3 = jnp.zeros((_SINGLE_F, A + 1), jnp.float32)
    w3 = w3.at[0:H, 0:A].set(p[f"{pre}_w3"])             # -> action mean
    w3 = w3.at[H:, A:A + 1].set(p["c_w3"])               # -> state value
    b3 = jnp.concatenate([p[f"{pre}_b3"], p["c_b3"]], axis=1)
    # weights in the MXU compute dtype; biases stay f32 (added post-accum).
    return dict(w1=w1.astype(compute_dtype), b1=b1,
                w2=w2.astype(compute_dtype), b2=b2,
                w3=w3.astype(compute_dtype), b3=b3)


def _fuse_joint(p, state_dim, action_dim, compute_dtype):
    """Pack actor1 + actor2 + critic (shared critic pass) into one MLP whose
    fused width is zero-padded to 256 (exact 256x256 MXU / vreg tiling)."""
    S, A, H = state_dim, action_dim, _HID
    F = _JOINT_F

    w1 = jnp.zeros((2 * S, F), jnp.float32)
    w1 = w1.at[0:S, 0:H].set(p["a1_w1"])
    w1 = w1.at[S:2 * S, H:2 * H].set(p["a2_w1"])
    w1 = w1.at[:, 2 * H:3 * H].set(p["c_w1"])
    b1 = jnp.zeros((1, F), jnp.float32)
    b1 = b1.at[:, 0:H].set(p["a1_b1"])
    b1 = b1.at[:, H:2 * H].set(p["a2_b1"])
    b1 = b1.at[:, 2 * H:3 * H].set(p["c_b1"])

    w2 = jnp.zeros((F, F), jnp.float32)
    w2 = w2.at[0:H, 0:H].set(p["a1_w2"])
    w2 = w2.at[H:2 * H, H:2 * H].set(p["a2_w2"])
    w2 = w2.at[2 * H:3 * H, 2 * H:3 * H].set(p["c_w2"])
    b2 = jnp.zeros((1, F), jnp.float32)
    b2 = b2.at[:, 0:H].set(p["a1_b2"])
    b2 = b2.at[:, H:2 * H].set(p["a2_b2"])
    b2 = b2.at[:, 2 * H:3 * H].set(p["c_b2"])

    w3 = jnp.zeros((F, 2 * A + 1), jnp.float32)
    w3 = w3.at[0:H, 0:A].set(p["a1_w3"])
    w3 = w3.at[H:2 * H, A:2 * A].set(p["a2_w3"])
    w3 = w3.at[2 * H:3 * H, 2 * A:2 * A + 1].set(p["c_w3"])
    b3 = jnp.concatenate([p["a1_b3"], p["a2_b3"], p["c_b3"]], axis=1)
    return dict(w1=w1.astype(compute_dtype), b1=b1,
                w2=w2.astype(compute_dtype), b2=b2,
                w3=w3.astype(compute_dtype), b3=b3)


def make_actor_critic_params(key, state_dim, action_dim, action_std_init,
                             compute_dtype=jnp.bfloat16):
    keys = jax.random.split(key, 9)
    p = {}
    p["a1_w1"], p["a1_b1"] = _linear_params(keys[0], state_dim, _HID)
    p["a1_w2"], p["a1_b2"] = _linear_params(keys[1], _HID, _HID)
    p["a1_w3"], p["a1_b3"] = _linear_params(keys[2], _HID, action_dim)
    p["a2_w1"], p["a2_b1"] = _linear_params(keys[3], state_dim, _HID)
    p["a2_w2"], p["a2_b2"] = _linear_params(keys[4], _HID, _HID)
    p["a2_w3"], p["a2_b3"] = _linear_params(keys[5], _HID, action_dim)
    p["c_w1"], p["c_b1"] = _linear_params(keys[6], 2 * state_dim, _HID)
    p["c_w2"], p["c_b2"] = _linear_params(keys[7], _HID, _HID)
    p["c_w3"], p["c_b3"] = _linear_params(keys[8], _HID, 1)
    p["action_var"] = jnp.full((1, action_dim),
                               action_std_init * action_std_init, jnp.float32)
    # Fused weight packs depend only on the raw Linear weights, so they never
    # go stale when set_action_std() changes action_var.
    p["fused1"] = _fuse_single(p, 1, state_dim, action_dim, compute_dtype)
    p["fused2"] = _fuse_single(p, 2, state_dim, action_dim, compute_dtype)
    p["fused_joint"] = _fuse_joint(p, state_dim, action_dim, compute_dtype)
    return p


def set_action_std(params, new_action_std):
    params = dict(params)
    A = params["action_var"].shape[1]
    params["action_var"] = jnp.full(
        (1, A), new_action_std * new_action_std, jnp.float32)
    return params


def _dist_consts(action_var, action_dim):
    """MVN(diag) constants: [1/var .., logprob_const] and scalar entropy."""
    var = action_var.reshape(1, action_dim).astype(jnp.float32)
    inv_var = 1.0 / var
    sum_log_var = jnp.sum(jnp.log(var))
    log2pi = jnp.log(2.0 * jnp.pi)
    lp_const = -0.5 * (action_dim * log2pi + sum_log_var)
    entropy = 0.5 * action_dim * (1.0 + log2pi) + 0.5 * sum_log_var
    dist = jnp.concatenate([inv_var, lp_const.reshape(1, 1)], axis=1)
    return dist, entropy


# ---------------------------------------------------------------------------
# Chip-aware tiling / compiler knobs
# ---------------------------------------------------------------------------
@functools.lru_cache(maxsize=None)
def _chip_config():
    """v5e/v6e (128 MiB VMEM): TM cap 4096, scoped-VMEM limit 96 MiB.
    v7x (64 MiB VMEM): TM cap 2048, limit 48 MiB, CORE_PARALLEL so the batch
    grid is actually split across the two TensorCores."""
    kind = ""
    try:
        kind = jax.devices()[0].device_kind.lower()
    except Exception:
        pass
    vmem_bytes = None
    try:
        vmem_bytes = int(pltpu.get_tpu_info().vmem_capacity_bytes)
    except Exception:
        pass
    if vmem_bytes is None:
        vmem_bytes = 64 * 2**20 if ("v7" in kind or "tpu7" in kind) else 128 * 2**20
    small_vmem = vmem_bytes <= 80 * 2**20            # v7x-class VMEM
    multi_core = ("v7" in kind) or ("tpu7" in kind)  # 2 TensorCores / chip
    if small_vmem:
        tm_cap, vmem_limit = 2048, min(48 * 2**20, vmem_bytes)
    else:
        tm_cap, vmem_limit = 4096, min(96 * 2**20, vmem_bytes)
    if multi_core and hasattr(pltpu, "CORE_PARALLEL"):
        dim_sem = (pltpu.CORE_PARALLEL,)
    else:
        dim_sem = ("parallel",)
    return {"tm_cap": tm_cap, "vmem_limit": vmem_limit, "dim_sem": dim_sem}


def _pick_block_rows(batch, block_rows):
    """Batch tile: chip-aware cap; multiple of 16 (bf16/f32 sublane rules)
    unless a single tile covers the whole batch."""
    cap = _chip_config()["tm_cap"]
    if block_rows is None:
        block_rows = cap
    block_rows = min(block_rows, cap)
    if block_rows >= batch:
        return batch
    tm = max(16, (block_rows // 16) * 16)
    return min(tm, batch)


def _compiler_params():
    cfg = _chip_config()
    return pltpu.CompilerParams(dimension_semantics=cfg["dim_sem"],
                                vmem_limit_bytes=cfg["vmem_limit"])


# ---------------------------------------------------------------------------
# pallas_call wrappers (jitted so the tiny host ops fuse with the kernel)
# ---------------------------------------------------------------------------
@functools.partial(jax.jit, static_argnames=("block_rows",))
def _evaluate_impl(fused, action_var, state, action, *, block_rows=None):
    B, S2 = state.shape
    A = action.shape[1]
    TM = _pick_block_rows(B, block_rows)
    dist, entropy = _dist_consts(action_var, A)

    kernel = functools.partial(_eval_kernel, action_dim=A)
    row = lambda i: (i, 0)      # advances with the batch grid
    const = lambda i: (0, 0)    # VMEM-resident across grid steps

    packed = pl.pallas_call(
        kernel,
        out_shape=jax.ShapeDtypeStruct((B, 2), jnp.float32),
        grid=(pl.cdiv(B, TM),),
        in_specs=[
            pl.BlockSpec((TM, S2), row),              # state  (f32)
            pl.BlockSpec((TM, A), row),               # action (f32)
            pl.BlockSpec((1, A + 1), const),          # dist constants (f32)
            pl.BlockSpec((S2, _SINGLE_F), const),     # fused W1 (compute dtype)
            pl.BlockSpec((1, _SINGLE_F), const),      # fused b1 (f32)
            pl.BlockSpec((_SINGLE_F, _SINGLE_F), const),
            pl.BlockSpec((1, _SINGLE_F), const),
            pl.BlockSpec((_SINGLE_F, A + 1), const),
            pl.BlockSpec((1, A + 1), const),
        ],
        out_specs=pl.BlockSpec((TM, 2), row),
        compiler_params=_compiler_params(),
    )(state, action, dist,
      fused["w1"], fused["b1"], fused["w2"], fused["b2"],
      fused["w3"], fused["b3"])

    return packed[:, 0], packed[:, 1:2], jnp.broadcast_to(entropy, (B,))


@functools.partial(jax.jit, static_argnames=("block_rows",))
def _joint_impl(fused, action_var, state, action1, action2, *, block_rows=None):
    B, S2 = state.shape
    A = action1.shape[1]
    TM = _pick_block_rows(B, block_rows)
    dist, entropy = _dist_consts(action_var, A)

    kernel = functools.partial(_joint_kernel, action_dim=A)
    row = lambda i: (i, 0)
    const = lambda i: (0, 0)

    packed = pl.pallas_call(
        kernel,
        out_shape=jax.ShapeDtypeStruct((B, 3), jnp.float32),
        grid=(pl.cdiv(B, TM),),
        in_specs=[
            pl.BlockSpec((TM, S2), row),
            pl.BlockSpec((TM, A), row),
            pl.BlockSpec((TM, A), row),
            pl.BlockSpec((1, A + 1), const),
            pl.BlockSpec((S2, _JOINT_F), const),
            pl.BlockSpec((1, _JOINT_F), const),
            pl.BlockSpec((_JOINT_F, _JOINT_F), const),
            pl.BlockSpec((1, _JOINT_F), const),
            pl.BlockSpec((_JOINT_F, 2 * A + 1), const),
            pl.BlockSpec((1, 2 * A + 1), const),
        ],
        out_specs=pl.BlockSpec((TM, 3), row),
        compiler_params=_compiler_params(),
    )(state, action1, action2, dist,
      fused["w1"], fused["b1"], fused["w2"], fused["b2"],
      fused["w3"], fused["b3"])

    ent = jnp.broadcast_to(entropy, (B,))
    return packed[:, 0], packed[:, 1], packed[:, 2:3], ent


def evaluate1(params, state, action, *, block_rows=None):
    return _evaluate_impl(params["fused1"], params["action_var"],
                          state, action, block_rows=block_rows)


def evaluate2(params, state, action, *, block_rows=None):
    return _evaluate_impl(params["fused2"], params["action_var"],
                          state, action, block_rows=block_rows)


def evaluate_joint(params, state, action1, action2, *, block_rows=None):
    """Fused evaluate1+evaluate2 on the same minibatch: one shared critic pass,
    one kernel launch. Returns (logprob1, logprob2, state_values, entropy)."""
    return _joint_impl(params["fused_joint"], params["action_var"],
                       state, action1, action2, block_rows=block_rows)


# TODO(synk): act1/act2 (MultivariateNormal.sample) are host-side rollout
# utilities with RNG; not part of the evaluate forward pass, not kernelized.


# ---------------------------------------------------------------------------
# Pure-JAX reference (raw, unfused weights).  compute_dtype mimics the MXU
# operand dtype (f32 or bf16) while keeping f32 accumulation / bias / tanh /
# log-prob math, matching the kernel's cast points.
# ---------------------------------------------------------------------------
def _reference(params, state, action, *, state_dim, action_dim, which,
               compute_dtype=jnp.float32):
    def layer(x, w, b, act=True):
        y = jnp.dot(x.astype(compute_dtype), w.astype(compute_dtype),
                    preferred_element_type=jnp.float32) + b
        return jnp.tanh(y) if act else y

    prefix = "a1" if which == 1 else "a2"
    actor_state = state[:, :state_dim] if which == 1 else state[:, state_dim:]
    h = layer(actor_state, params[f"{prefix}_w1"], params[f"{prefix}_b1"])
    h = layer(h, params[f"{prefix}_w2"], params[f"{prefix}_b2"])
    mean = layer(h, params[f"{prefix}_w3"], params[f"{prefix}_b3"], act=False)

    var = params["action_var"]
    inv_var = 1.0 / var
    diff = action - mean
    k = action_dim
    log_2pi = jnp.log(2.0 * jnp.pi)
    logprob = -0.5 * (jnp.sum(diff * diff * inv_var, axis=-1)
                      + k * log_2pi + jnp.sum(jnp.log(var)))
    entropy = jnp.full((state.shape[0],),
                       0.5 * k * (1.0 + log_2pi) + 0.5 * jnp.sum(jnp.log(var)))

    hc = layer(state, params["c_w1"], params["c_b1"])
    hc = layer(hc, params["c_w2"], params["c_b2"])
    value = layer(hc, params["c_w3"], params["c_b3"], act=False)
    return logprob, value, entropy


# ---------------------------------------------------------------------------
if __name__ == "__main__":
    state_dim = 16
    action_dim = 4
    batch = 48
    action_std_init = 0.6

    key = jax.random.PRNGKey(0)
    k_params, k_state, k_a1, k_a2 = jax.random.split(key, 4)

    # Two parameter sets sharing the SAME raw weights: an f32 compute pack
    # (exact-path validation) and the default bf16 compute pack.
    params_f32 = make_actor_critic_params(k_params, state_dim, action_dim,
                                          action_std_init,
                                          compute_dtype=jnp.float32)
    params_bf16 = make_actor_critic_params(k_params, state_dim, action_dim,
                                           action_std_init,
                                           compute_dtype=jnp.bfloat16)

    state = jax.random.normal(k_state, (batch, 2 * state_dim), jnp.float32)
    action1 = jax.random.normal(k_a1, (batch, action_dim), jnp.float32)
    action2 = jax.random.normal(k_a2, (batch, action_dim), jnp.float32)

    def _close(a, b, tol=1e-3):
        return bool(jnp.allclose(a, b, atol=tol, rtol=tol))

    # Exact f32 references (PyTorch semantics).
    lp1_r, val_r, ent_r = _reference(params_f32, state, action1,
                                     state_dim=state_dim,
                                     action_dim=action_dim, which=1)
    lp2_r, _, _ = _reference(params_f32, state, action2,
                             state_dim=state_dim,
                             action_dim=action_dim, which=2)

    # ---- 1) f32 compute path: tight check, multi-step grid -----------------
    lp1, val1, ent1 = evaluate1(params_f32, state, action1, block_rows=16)
    lp2, val2, ent2 = evaluate2(params_f32, state, action2)
    jlp1, jlp2, jval, jent = evaluate_joint(params_f32, state, action1,
                                            action2, block_rows=16)
    jax.block_until_ready((lp1, val1, ent1, lp2, val2, ent2,
                           jlp1, jlp2, jval, jent))
    assert lp1.shape == (batch,) and val1.shape == (batch, 1)
    assert ent1.shape == (batch,) and jval.shape == (batch, 1)
    assert _close(lp1, lp1_r) and _close(val1, val_r) and _close(ent1, ent_r)
    assert _close(lp2, lp2_r) and _close(val2, val_r) and _close(ent2, ent_r)
    assert _close(jlp1, lp1_r) and _close(jlp2, lp2_r)
    assert _close(jval, val_r) and _close(jent, ent_r)

    # ---- 2) default bf16 compute path ---------------------------------------
    # Check against a bf16-operand reference (same cast points, f32 accum).
    lp1_b, val_b, _ = _reference(params_f32, state, action1,
                                 state_dim=state_dim, action_dim=action_dim,
                                 which=1, compute_dtype=jnp.bfloat16)
    lp2_b, _, _ = _reference(params_f32, state, action2,
                             state_dim=state_dim, action_dim=action_dim,
                             which=2, compute_dtype=jnp.bfloat16)
    klp1, kval1, kent1 = evaluate1(params_bf16, state, action1, block_rows=16)
    kjlp1, kjlp2, kjval, _ = evaluate_joint(params_bf16, state,
                                            action1, action2)
    jax.block_until_ready((klp1, kval1, kent1, kjlp1, kjlp2, kjval))
    assert _close(klp1, lp1_b, 3e-2) and _close(kval1, val_b, 3e-2)
    assert _close(kjlp1, lp1_b, 3e-2) and _close(kjlp2, lp2_b, 3e-2)
    assert _close(kjval, val_b, 3e-2) and _close(kent1, ent_r)
    # Loose sanity bound against the exact f32 reference (bf16 quantization).
    assert float(jnp.max(jnp.abs(klp1 - lp1_r))) < 1.5

    print("KERNEL_OK")
</pallas_src>

<mosaic_0001>
module attributes {stable_mosaic.version = 11 : i64} {
  func.func @_eval_kernel(%arg0: i32, %arg1: memref<16x32xf32, #tpu.memory_space<vmem>>, %arg2: memref<16x4xf32, #tpu.memory_space<vmem>>, %arg3: memref<1x5xf32, #tpu.memory_space<vmem>>, %arg4: memref<32x128xf32, #tpu.memory_space<vmem>>, %arg5: memref<1x128xf32, #tpu.memory_space<vmem>>, %arg6: memref<128x128xf32, #tpu.memory_space<vmem>>, %arg7: memref<1x128xf32, #tpu.memory_space<vmem>>, %arg8: memref<128x5xf32, #tpu.memory_space<vmem>>, %arg9: memref<1x5xf32, #tpu.memory_space<vmem>>, %arg10: memref<16x2xf32, #tpu.memory_space<vmem>>) attributes {dimension_semantics = [#tpu.dimension_semantics<parallel>], iteration_bounds = array<i64: 3>, scalar_prefetch = 0 : i64, scratch_operands = 0 : i64, tpu.core_type = #tpu.core_type<tc>, window_params = [{transform_indices = @transform_0, window_bounds = array<i64: 16, 32>}, {transform_indices = @transform_1, window_bounds = array<i64: 16, 4>}, {pipeline_mode = #tpu.pipeline_mode<synchronous>, transform_indices = @transform_2, window_bounds = array<i64: 1, 5>}, {pipeline_mode = #tpu.pipeline_mode<synchronous>, transform_indices = @transform_3, window_bounds = array<i64: 32, 128>}, {pipeline_mode = #tpu.pipeline_mode<synchronous>, transform_indices = @transform_4, window_bounds = array<i64: 1, 128>}, {pipeline_mode = #tpu.pipeline_mode<synchronous>, transform_indices = @transform_5, window_bounds = array<i64: 128, 128>}, {pipeline_mode = #tpu.pipeline_mode<synchronous>, transform_indices = @transform_6, window_bounds = array<i64: 1, 128>}, {pipeline_mode = #tpu.pipeline_mode<synchronous>, transform_indices = @transform_7, window_bounds = array<i64: 128, 5>}, {pipeline_mode = #tpu.pipeline_mode<synchronous>, transform_indices = @transform_8, window_bounds = array<i64: 1, 5>}, {transform_indices = @transform_9, window_bounds = array<i64: 16, 2>}]} {
    %c0 = arith.constant 0 : index
    %c0_0 = arith.constant 0 : index
    %0 = vector.load %arg1[%c0, %c0_0] : memref<16x32xf32, #tpu.memory_space<vmem>>, vector<16x32xf32>
    %c0_1 = arith.constant 0 : index
    %c0_2 = arith.constant 0 : index
    %1 = vector.load %arg4[%c0_1, %c0_2] : memref<32x128xf32, #tpu.memory_space<vmem>>, vector<32x128xf32>
    %cst = arith.constant dense<0.000000e+00> : vector<16x128xf32>
    %2 = tpu.matmul %0, %1, %cst {dimension_numbers = #tpu.dot_dimension_numbers<[1], [0], [0], [1], [0, 0, 1, 1], [], []>} : vector<16x32xf32>, vector<32x128xf32>, vector<16x128xf32> -> vector<16x128xf32>
    %c0_3 = arith.constant 0 : index
    %c0_4 = arith.constant 0 : index
    %3 = vector.load %arg5[%c0_3, %c0_4] : memref<1x128xf32, #tpu.memory_space<vmem>>, vector<1x128xf32>
    %4 = vector.broadcast %3 : vector<1x128xf32> to vector<16x128xf32>
    %5 = arith.addf %2, %4 : vector<16x128xf32>
    %6 = math.tanh %5 : vector<16x128xf32>
    %c0_5 = arith.constant 0 : index
    %c0_6 = arith.constant 0 : index
    %7 = vector.load %arg6[%c0_5, %c0_6] : memref<128x128xf32, #tpu.memory_space<vmem>>, vector<128x128xf32>
    %cst_7 = arith.constant dense<0.000000e+00> : vector<16x128xf32>
    %8 = tpu.matmul %6, %7, %cst_7 {dimension_numbers = #tpu.dot_dimension_numbers<[1], [0], [0], [1], [0, 0, 1, 1], [], []>} : vector<16x128xf32>, vector<128x128xf32>, vector<16x128xf32> -> vector<16x128xf32>
    %c0_8 = arith.constant 0 : index
    %c0_9 = arith.constant 0 : index
    %9 = vector.load %arg7[%c0_8, %c0_9] : memref<1x128xf32, #tpu.memory_space<vmem>>, vector<1x128xf32>
    %10 = vector.broadcast %9 : vector<1x128xf32> to vector<16x128xf32>
    %11 = arith.addf %8, %10 : vector<16x128xf32>
    %12 = math.tanh %11 : vector<16x128xf32>
    %c0_10 = arith.constant 0 : index
    %c0_11 = arith.constant 0 : index
    %13 = vector.load %arg8[%c0_10, %c0_11] : memref<128x5xf32, #tpu.memory_space<vmem>>, vector<128x5xf32>
    %cst_12 = arith.constant dense<0.000000e+00> : vector<16x5xf32>
    %14 = tpu.matmul %12, %13, %cst_12 {dimension_numbers = #tpu.dot_dimension_numbers<[1], [0], [0], [1], [0, 0, 1, 1], [], []>} : vector<16x128xf32>, vector<128x5xf32>, vector<16x5xf32> -> vector<16x5xf32>
    %c0_13 = arith.constant 0 : index
    %c0_14 = arith.constant 0 : index
    %15 = vector.load %arg9[%c0_13, %c0_14] : memref<1x5xf32, #tpu.memory_space<vmem>>, vector<1x5xf32>
    %16 = vector.broadcast %15 : vector<1x5xf32> to vector<16x5xf32>
    %17 = arith.addf %14, %16 : vector<16x5xf32>
    %c0_15 = arith.constant 0 : index
    %c0_16 = arith.constant 0 : index
    %18 = vector.load %arg3[%c0_15, %c0_16] : memref<1x5xf32, #tpu.memory_space<vmem>>, vector<1x4xf32>
    %c0_17 = arith.constant 0 : index
    %c4 = arith.constant 4 : index
    %19 = vector.load %arg3[%c0_17, %c4] : memref<1x5xf32, #tpu.memory_space<vmem>>, vector<1x1xf32>
    %c0_18 = arith.constant 0 : index
    %c0_19 = arith.constant 0 : index
    %20 = vector.load %arg2[%c0_18, %c0_19] : memref<16x4xf32, #tpu.memory_space<vmem>>, vector<16x4xf32>
    %21 = vector.extract_strided_slice %17 {offsets = [0, 0], sizes = [16, 4], strides = [1, 1]} : vector<16x5xf32> to vector<16x4xf32>
    %22 = arith.subf %20, %21 : vector<16x4xf32>
    %23 = arith.mulf %22, %22 : vector<16x4xf32>
    %24 = vector.broadcast %18 : vector<1x4xf32> to vector<16x4xf32>
    %25 = arith.mulf %23, %24 : vector<16x4xf32>
    %cst_20 = arith.constant dense<0.000000e+00> : vector<16xf32>
    %26 = vector.multi_reduction <add>, %25, %cst_20 [1] : vector<16x4xf32> to vector<16xf32>
    %27 = vector.shape_cast %26 : vector<16xf32> to vector<16x1xf32>
    %cst_21 = arith.constant 5.000000e-01 : f32
    %28 = vector.broadcast %cst_21 : f32 to vector<16x1xf32>
    %29 = arith.mulf %28, %27 : vector<16x1xf32>
    %30 = vector.broadcast %19 : vector<1x1xf32> to vector<16x1xf32>
    %31 = arith.subf %30, %29 : vector<16x1xf32>
    %32 = vector.extract_strided_slice %17 {offsets = [0, 4], sizes = [16, 1], strides = [1, 1]} : vector<16x5xf32> to vector<16x1xf32>
    %33 = tpu.concatenate %31, %32 in 1 : vector<16x1xf32>, vector<16x1xf32> -> vector<16x2xf32>
    %c0_22 = arith.constant 0 : index
    %c0_23 = arith.constant 0 : index
    %34 = vector.load %arg10[%c0_22, %c0_23] : memref<16x2xf32, #tpu.memory_space<vmem>>, vector<16x2xf32>
    tpu.vector_store %arg10[%c0_22, %c0_23], %33 {strides = array<i32>} : memref<16x2xf32, #tpu.memory_space<vmem>>, vector<16x2xf32>,
    return
  }
  func.func @transform_0(%arg0: i32) -> (i32, i32) {
    %c0_i32 = arith.constant 0 : i32
    %c0_i32_0 = arith.constant 0 : i32
    return %arg0, %c0_i32 : i32, i32
  }
  func.func @transform_1(%arg0: i32) -> (i32, i32) {
    %c0_i32 = arith.constant 0 : i32
    %c0_i32_0 = arith.constant 0 : i32
    return %arg0, %c0_i32 : i32, i32
  }
  func.func @transform_2(%arg0: i32) -> (i32, i32) {
    %c0_i32 = arith.constant 0 : i32
    %c0_i32_0 = arith.constant 0 : i32
    %c0_i32_1 = arith.constant 0 : i32
    return %c0_i32, %c0_i32_0 : i32, i32
  }
  func.func @transform_3(%arg0: i32) -> (i32, i32) {
    %c0_i32 = arith.constant 0 : i32
    %c0_i32_0 = arith.constant 0 : i32
    %c0_i32_1 = arith.constant 0 : i32
    return %c0_i32, %c0_i32_0 : i32, i32
  }
  func.func @transform_4(%arg0: i32) -> (i32, i32) {
    %c0_i32 = arith.constant 0 : i32
    %c0_i32_0 = arith.constant 0 : i32
    %c0_i32_1 = arith.constant 0 : i32
    return %c0_i32, %c0_i32_0 : i32, i32
  }
  func.func @transform_5(%arg0: i32) -> (i32, i32) {
    %c0_i32 = arith.constant 0 : i32
    %c0_i32_0 = arith.constant 0 : i32
    %c0_i32_1 = arith.constant 0 : i32
    return %c0_i32, %c0_i32_0 : i32, i32
  }
  func.func @transform_6(%arg0: i32) -> (i32, i32) {
    %c0_i32 = arith.constant 0 : i32
    %c0_i32_0 = arith.constant 0 : i32
    %c0_i32_1 = arith.constant 0 : i32
    return %c0_i32, %c0_i32_0 : i32, i32
  }
  func.func @transform_7(%arg0: i32) -> (i32, i32) {
    %c0_i32 = arith.constant 0 : i32
    %c0_i32_0 = arith.constant 0 : i32
    %c0_i32_1 = arith.constant 0 : i32
    return %c0_i32, %c0_i32_0 : i32, i32
  }
  func.func @transform_8(%arg0: i32) -> (i32, i32) {
    %c0_i32 = arith.constant 0 : i32
    %c0_i32_0 = arith.constant 0 : i32
    %c0_i32_1 = arith.constant 0 : i32
    return %c0_i32, %c0_i32_0 : i32, i32
  }
  func.func @transform_9(%arg0: i32) -> (i32, i32) {
    %c0_i32 = arith.constant 0 : i32
    %c0_i32_0 = arith.constant 0 : i32
    return %arg0, %c0_i32 : i32, i32
  }
}

</mosaic_0001>

<llo_original>
// kernel: _evaluate_impl.1
$region0: #{_evaluate_impl.1}
  #allocation0 [shape = 'u32[]', space=smem, size = 0x4, offset = 0x4, fixed_abs, tag = 'smem constant byte address 0x4 - core index']
  #allocation1 [shape = 'u32[72,128]{1,0:T(1,128)}', space=vmem, size = 0x9000, scoped, tag = 'internal scratch']
  %s0 = inlined_call_operand.vmem [shape: f32[48,32], index: 0, kind: input, shape index: {}]
  %s1 = inlined_call_operand.vmem [shape: f32[48,4], index: 1, kind: input, shape index: {}]
  %s2 = inlined_call_operand.vmem [shape: f32[1,5], index: 2, kind: input, shape index: {}]
  %s3 = inlined_call_operand.vmem [shape: f32[32,128], index: 3, kind: input, shape index: {}]
  %s4 = inlined_call_operand.vmem [shape: f32[1,128], index: 4, kind: input, shape index: {}]
  %s5 = inlined_call_operand.vmem [shape: f32[128,128], index: 5, kind: input, shape index: {}]
  %s6 = inlined_call_operand.vmem [shape: f32[1,128], index: 6, kind: input, shape index: {}]
  %s7 = inlined_call_operand.vmem [shape: f32[128,5], index: 7, kind: input, shape index: {}]
  %s8 = inlined_call_operand.vmem [shape: f32[1,5], index: 8, kind: input, shape index: {}]
  %s9 = inlined_call_operand.vmem [shape: f32[48,2], index: 9, kind: output, shape index: {}]
  %s10 = sld [smem:[#allocation0]]
  $region69: #{_evaluate_impl.1} parent=0
    _
  %s12 = ssub.s32 1, %s10
  %s13 = scalar_select 0, %s12, %s10
  loop: start=0, step=1, limit=5
  $region2: #{_evaluate_impl.1} parent=0 // loop_pre_header
    _
  $region3: #{_evaluate_impl.1} parent=0 // loop_header
    %s15 = sphi 0, %s19
    %p16 = scmp.ge.s32.totalorder %s15, 5
    %s25 = sphi 0, %s27
    %s28 = sphi 0, %s25
    %s29 = sphi 0, %s28
    %s45 = sphi 0, %s29
    %s51 = sphi 0, %s53
    %s54 = sphi 0, %s51
    %s55 = sphi 0, %s54
    %s71 = sphi 0, %s55
    %s75 = sphi 0, %s75
    %s77 = sphi 0, %s75
    %s78 = sphi 0, %s77
    %s92 = sphi 0, %s78
    %s96 = sphi 0, %s96
    %s98 = sphi 0, %s96
    %s99 = sphi 0, %s98
    %s113 = sphi 0, %s99
    %s117 = sphi 0, %s117
    %s119 = sphi 0, %s117
    %s120 = sphi 0, %s119
    %s134 = sphi 0, %s120
    %s138 = sphi 0, %s138
    %s140 = sphi 0, %s138
    %s141 = sphi 0, %s140
    %s155 = sphi 0, %s141
    %s159 = sphi 0, %s159
    %s161 = sphi 0, %s159
    %s162 = sphi 0, %s161
    %s176 = sphi 0, %s162
    %s180 = sphi 0, %s180
    %s182 = sphi 0, %s180
    %s183 = sphi 0, %s182
    %s197 = sphi 0, %s183
    %s201 = sphi 0, %s201
    %s203 = sphi 0, %s201
    %s204 = sphi 0, %s203
    %s218 = sphi 0, %s204
    %s224 = sphi 0, %s226
    %s227 = sphi 0, %s224
    %s228 = sphi 0, %s227
    %s244 = sphi 0, %s228
  $region4: #{_evaluate_impl.1} parent=0 // loop_header_branch
    %18 = sbr.rel (%p16) target = $region8
  $region5: #{_evaluate_impl.1} parent=0 // loop_body
    %s20 = ssub.s32 %s15, 1
    %s21 = ssub.s32 %s15, 2
    %s22 = sadd.s32 %s15, 1
    %s23 = ssub.s32 %s15, %s22
    %p24 = scmp.eq.s32.totalorder %s23, 0
    %s26 = sadd.s32 %s25, 1
    %s27 = scalar_select %p24, %s25, %s26
    %p30 = pneg %p24
    %p31 = scmp.eq.s32.totalorder %s15, 2
    %p32 = por %p30, %p31
    %p33 = scmp.ne.s32.totalorder %s25, %s28
    %p34 = scmp.eq.s32.totalorder %s15, 0
    %p35 = por %p33, %p34
    %p36 = scmp.ne.s32.totalorder %s25, %s28
    %p37 = scmp.eq.s32.totalorder %s20, 2
    %p38 = por %p36, %p37
    %p39 = scmp.ne.s32.totalorder %s28, %s29
    %p40 = scmp.eq.s32.totalorder %s20, 0
    %p41 = por %p39, %p40
    %p42 = scmp.ne.s32.totalorder %s28, %s29
    %p43 = scmp.eq.s32.totalorder %s21, 2
    %p44 = por %p42, %p43
    %p46 = scmp.ne.s32.totalorder %s29, %s45
    %p47 = scmp.eq.s32.totalorder %s21, 0
    %p48 = por %p46, %p47
    %s49 = ssub.s32 %s15, %s22
    %p50 = scmp.eq.s32.totalorder %s49, 0
    %s52 = sadd.s32 %s51, 1
    %s53 = scalar_select %p50, %s51, %s52
    %p56 = pneg %p50
    %p57 = scmp.eq.s32.totalorder %s15, 2
    %p58 = por %p56, %p57
    %p59 = scmp.ne.s32.totalorder %s51, %s54
    %p60 = scmp.eq.s32.totalorder %s15, 0
    %p61 = por %p59, %p60
    %p62 = scmp.ne.s32.totalorder %s51, %s54
    %p63 = scmp.eq.s32.totalorder %s20, 2
    %p64 = por %p62, %p63
    %p65 = scmp.ne.s32.totalorder %s54, %s55
    %p66 = scmp.eq.s32.totalorder %s20, 0
    %p67 = por %p65, %p66
    %p68 = scmp.ne.s32.totalorder %s54, %s55
    %p69 = scmp.eq.s32.totalorder %s21, 2
    %p70 = por %p68, %p69
    %p72 = scmp.ne.s32.totalorder %s55, %s71
    %p73 = scmp.eq.s32.totalorder %s21, 0
    %p74 = por %p72, %p73
    %s76 = sadd.s32 %s75, 1
    %p79 = scmp.eq.s32.totalorder %s15, 2
    %p80 = scmp.ne.s32.totalorder %s75, %s77
    %p81 = scmp.eq.s32.totalorder %s15, 0
    %p82 = por %p80, %p81
    %p83 = scmp.ne.s32.totalorder %s75, %s77
    %p84 = scmp.eq.s32.totalorder %s20, 2
    %p85 = por %p83, %p84
    %p86 = scmp.ne.s32.totalorder %s77, %s78
    %p87 = scmp.eq.s32.totalorder %s20, 0
    %p88 = por %p86, %p87
    %p89 = scmp.ne.s32.totalorder %s77, %s78
    %p90 = scmp.eq.s32.totalorder %s21, 2
    %p91 = por %p89, %p90
    %p93 = scmp.ne.s32.totalorder %s78, %s92
    %p94 = scmp.eq.s32.totalorder %s21, 0
    %p95 = por %p93, %p94
    %s97 = sadd.s32 %s96, 1
    %p100 = scmp.eq.s32.totalorder %s15, 2
    %p101 = scmp.ne.s32.totalorder %s96, %s98
    %p102 = scmp.eq.s32.totalorder %s15, 0
    %p103 = por %p101, %p102
    %p104 = scmp.ne.s32.totalorder %s96, %s98
    %p105 = scmp.eq.s32.totalorder %s20, 2
    %p106 = por %p104, %p105
    %p107 = scmp.ne.s32.totalorder %s98, %s99
    %p108 = scmp.eq.s32.totalorder %s20, 0
    %p109 = por %p107, %p108
    %p110 = scmp.ne.s32.totalorder %s98, %s99
    %p111 = scmp.eq.s32.totalorder %s21, 2
    %p112 = por %p110, %p111
    %p114 = scmp.ne.s32.totalorder %s99, %s113
    %p115 = scmp.eq.s32.totalorder %s21, 0
    %p116 = por %p114, %p115
    %s118 = sadd.s32 %s117, 1
    %p121 = scmp.eq.s32.totalorder %s15, 2
    %p122 = scmp.ne.s32.totalorder %s117, %s119
    %p123 = scmp.eq.s32.totalorder %s15, 0
    %p124 = por %p122, %p123
    %p125 = scmp.ne.s32.totalorder %s117, %s119
    %p126 = scmp.eq.s32.totalorder %s20, 2
    %p127 = por %p125, %p126
    %p128 = scmp.ne.s32.totalorder %s119, %s120
    %p129 = scmp.eq.s32.totalorder %s20, 0
    %p130 = por %p128, %p129
    %p131 = scmp.ne.s32.totalorder %s119, %s120
    %p132 = scmp.eq.s32.totalorder %s21, 2
    %p133 = por %p131, %p132
    %p135 = scmp.ne.s32.totalorder %s120, %s134
    %p136 = scmp.eq.s32.totalorder %s21, 0
    %p137 = por %p135, %p136
    %s139 = sadd.s32 %s138, 1
    %p142 = scmp.eq.s32.totalorder %s15, 2
    %p143 = scmp.ne.s32.totalorder %s138, %s140
    %p144 = scmp.eq.s32.totalorder %s15, 0
    %p145 = por %p143, %p144
    %p146 = scmp.ne.s32.totalorder %s138, %s140
    %p147 = scmp.eq.s32.totalorder %s20, 2
    %p148 = por %p146, %p147
    %p149 = scmp.ne.s32.totalorder %s140, %s141
    %p150 = scmp.eq.s32.totalorder %s20, 0
    %p151 = por %p149, %p150
    %p152 = scmp.ne.s32.totalorder %s140, %s141
    %p153 = scmp.eq.s32.totalorder %s21, 2
    %p154 = por %p152, %p153
    %p156 = scmp.ne.s32.totalorder %s141, %s155
    %p157 = scmp.eq.s32.totalorder %s21, 0
    %p158 = por %p156, %p157
    %s160 = sadd.s32 %s159, 1
    %p163 = scmp.eq.s32.totalorder %s15, 2
    %p164 = scmp.ne.s32.totalorder %s159, %s161
    %p165 = scmp.eq.s32.totalorder %s15, 0
    %p166 = por %p164, %p165
    %p167 = scmp.ne.s32.totalorder %s159, %s161
    %p168 = scmp.eq.s32.totalorder %s20, 2
    %p169 = por %p167, %p168
    %p170 = scmp.ne.s32.totalorder %s161, %s162
    %p171 = scmp.eq.s32.totalorder %s20, 0
    %p172 = por %p170, %p171
    %p173 = scmp.ne.s32.totalorder %s161, %s162
    %p174 = scmp.eq.s32.totalorder %s21, 2
    %p175 = por %p173, %p174
    %p177 = scmp.ne.s32.totalorder %s162, %s176
    %p178 = scmp.eq.s32.totalorder %s21, 0
    %p179 = por %p177, %p178
    %s181 = sadd.s32 %s180, 1
    %p184 = scmp.eq.s32.totalorder %s15, 2
    %p185 = scmp.ne.s32.totalorder %s180, %s182
    %p186 = scmp.eq.s32.totalorder %s15, 0
    %p187 = por %p185, %p186
    %p188 = scmp.ne.s32.totalorder %s180, %s182
    %p189 = scmp.eq.s32.totalorder %s20, 2
    %p190 = por %p188, %p189
    %p191 = scmp.ne.s32.totalorder %s182, %s183
    %p192 = scmp.eq.s32.totalorder %s20, 0
    %p193 = por %p191, %p192
    %p194 = scmp.ne.s32.totalorder %s182, %s183
    %p195 = scmp.eq.s32.totalorder %s21, 2
    %p196 = por %p194, %p195
    %p198 = scmp.ne.s32.totalorder %s183, %s197
    %p199 = scmp.eq.s32.totalorder %s21, 0
    %p200 = por %p198, %p199
    %s202 = sadd.s32 %s201, 1
    %p205 = scmp.eq.s32.totalorder %s15, 2
    %p206 = scmp.ne.s32.totalorder %s201, %s203
    %p207 = scmp.eq.s32.totalorder %s15, 0
    %p208 = por %p206, %p207
    %p209 = scmp.ne.s32.totalorder %s201, %s203
    %p210 = scmp.eq.s32.totalorder %s20, 2
    %p211 = por %p209, %p210
    %p212 = scmp.ne.s32.totalorder %s203, %s204
    %p213 = scmp.eq.s32.totalorder %s20, 0
    %p214 = por %p212, %p213
    %p215 = scmp.ne.s32.totalorder %s203, %s204
    %p216 = scmp.eq.s32.totalorder %s21, 2
    %p217 = por %p215, %p216
    %p219 = scmp.ne.s32.totalorder %s204, %s218
    %p220 = scmp.eq.s32.totalorder %s21, 0
    %p221 = por %p219, %p220
    %s222 = ssub.s32 %s15, %s22
    %p223 = scmp.eq.s32.totalorder %s222, 0
    %s225 = sadd.s32 %s224, 1
    %s226 = scalar_select %p223, %s224, %s225
    %p229 = pneg %p223
    %p230 = scmp.eq.s32.totalorder %s15, 2
    %p231 = por %p229, %p230
    %p232 = scmp.ne.s32.totalorder %s224, %s227
    %p233 = scmp.eq.s32.totalorder %s15, 0
    %p234 = por %p232, %p233
    %p235 = scmp.ne.s32.totalorder %s224, %s227
    %p236 = scmp.eq.s32.totalorder %s20, 2
    %p237 = por %p235, %p236
    %p238 = scmp.ne.s32.totalorder %s227, %s228
    %p239 = scmp.eq.s32.totalorder %s20, 0
    %p240 = por %p238, %p239
    %p241 = scmp.ne.s32.totalorder %s227, %s228
    %p242 = scmp.eq.s32.totalorder %s21, 2
    %p243 = por %p241, %p242
    %p245 = scmp.ne.s32.totalorder %s228, %s244
    %p246 = scmp.eq.s32.totalorder %s21, 0
    %p247 = por %p245, %p246
    %p248 = scmp.le.s32.totalorder 1, %s15
    %p249 = scmp.lt.s32.totalorder %s15, 4
    %p250 = pnand %p248, %p249
    %p251 = pneg %p250
    // Predicated region
    $region9: #{_evaluate_impl.1} parent=5 // pred_check
      _
    $region10: #{_evaluate_impl.1} parent=5 // pred_check_branch
      %253 = sbr.rel (%p250) target = $region12
    $region11: #{_evaluate_impl.1} parent=5 // pred_region
      %s254 = ssub.s32 %s15, 1
      // Predicated region
      $region13: #{_evaluate_impl.1} parent=11 // pred_check
        %p255 = pneg %p88
      $region14: #{_evaluate_impl.1} parent=11 // pred_check_branch
        %257 = sbr.rel (%p255) target = $region16
      $region15: #{_evaluate_impl.1} parent=11 // pred_region
        _
      $region16: #{_evaluate_impl.1} parent=11 // pred_fallthru
        _
      // Predicated region
      $region17: #{_evaluate_impl.1} parent=11 // pred_check
        %p258 = pneg %p109
      $region18: #{_evaluate_impl.1} parent=11 // pred_check_branch
        %260 = sbr.rel (%p258) target = $region20
      $region19: #{_evaluate_impl.1} parent=11 // pred_region
        _
      $region20: #{_evaluate_impl.1} parent=11 // pred_fallthru
        _
      // Predicated region
      $region21: #{_evaluate_impl.1} parent=11 // pred_check
        %p261 = pneg %p130
      $region22: #{_evaluate_impl.1} parent=11 // pred_check_branch
        %263 = sbr.rel (%p261) target = $region24
      $region23: #{_evaluate_impl.1} parent=11 // pred_region
        _
      $region24: #{_evaluate_impl.1} parent=11 // pred_fallthru
        _
      // Predicated region
      $region25: #{_evaluate_impl.1} parent=11 // pred_check
        %p264 = pneg %p151
      $region26: #{_evaluate_impl.1} parent=11 // pred_check_branch
        %266 = sbr.rel (%p264) target = $region28
      $region27: #{_evaluate_impl.1} parent=11 // pred_region
        _
      $region28: #{_evaluate_impl.1} parent=11 // pred_fallthru
        _
      // Predicated region
      $region29: #{_evaluate_impl.1} parent=11 // pred_check
        %p267 = pneg %p172
      $region30: #{_evaluate_impl.1} parent=11 // pred_check_branch
        %269 = sbr.rel (%p267) target = $region32
      $region31: #{_evaluate_impl.1} parent=11 // pred_region
        _
      $region32: #{_evaluate_impl.1} parent=11 // pred_fallthru
        _
      // Predicated region
      $region33: #{_evaluate_impl.1} parent=11 // pred_check
        %p270 = pneg %p193
      $region34: #{_evaluate_impl.1} parent=11 // pred_check_branch
        %272 = sbr.rel (%p270) target = $region36
      $region35: #{_evaluate_impl.1} parent=11 // pred_region
        _
      $region36: #{_evaluate_impl.1} parent=11 // pred_fallthru
        _
      // Predicated region
      $region37: #{_evaluate_impl.1} parent=11 // pred_check
        %p273 = pneg %p214
      $region38: #{_evaluate_impl.1} parent=11 // pred_check_branch
        %275 = sbr.rel (%p273) target = $region40
      $region39: #{_evaluate_impl.1} parent=11 // pred_region
        _
      $region40: #{_evaluate_impl.1} parent=11 // pred_fallthru
        _
    $region12: #{_evaluate_impl.1} parent=5 // pred_fallthru
      _
    %p276 = scmp.lt.s32.totalorder %s15, 3
    // Predicated region
    $region41: #{_evaluate_impl.1} parent=5 // pred_check
      %p277 = pneg %p276
    $region42: #{_evaluate_impl.1} parent=5 // pred_check_branch
      %279 = sbr.rel (%p277) target = $region44
    $region43: #{_evaluate_impl.1} parent=5 // pred_region
      // Predicated region
      $region45: #{_evaluate_impl.1} parent=43 // pred_check
        %p280 = pneg %p35
      $region46: #{_evaluate_impl.1} parent=43 // pred_check_branch
        %282 = sbr.rel (%p280) target = $region48
      $region47: #{_evaluate_impl.1} parent=43 // pred_region
        %s283 = smul.u32 2, %s15
        %p284 = scmp.lt.s32.totalorder %s283, 5
        %s285 = scalar_select %p284, %s283, 5
        %s286 = smul.addr %s285, 8
        %s287 = scalar_lea.vmem %s0, %s286
        %s288 = smul.u32 2, %s15
      $region48: #{_evaluate_impl.1} parent=43 // pred_fallthru
        _
      // Predicated region
      $region49: #{_evaluate_impl.1} parent=43 // pred_check
        %p289 = pneg %p61
      $region50: #{_evaluate_impl.1} parent=43 // pred_check_branch
        %291 = sbr.rel (%p289) target = $region52
      $region51: #{_evaluate_impl.1} parent=43 // pred_region
        %s292 = smul.u32 2, %s15
        %p293 = scmp.lt.s32.totalorder %s292, 5
        %s294 = scalar_select %p293, %s292, 5
        %s295 = smul.addr %s294, 8
        %s296 = scalar_lea.vmem %s1, %s295
        %s297 = smul.u32 2, %s15
      $region52: #{_evaluate_impl.1} parent=43 // pred_fallthru
        _
    $region44: #{_evaluate_impl.1} parent=5 // pred_fallthru
      _
    %p298 = scmp.le.s32.totalorder 1, %s15
    %p299 = scmp.lt.s32.totalorder %s15, 4
    %p300 = pnand %p298, %p299
    %p301 = pneg %p300
    // Predicated region
    $region53: #{_evaluate_impl.1} parent=5 // pred_check
      _
    $region54: #{_evaluate_impl.1} parent=5 // pred_check_branch
      %303 = sbr.rel (%p300) target = $region56
    $region55: #{_evaluate_impl.1} parent=5 // pred_region
      %s304 = ssub.s32 %s15, 1
      %s305 = smul.u32 2, %s20
      %p306 = scmp.lt.s32.totalorder %s305, 5
      %s307 = scalar_select %p306, %s305, 5
      %s308 = smul.addr %s307, 8
      %s309 = scalar_lea.vmem %s0, %s308
      %p310 = pneg %p41
      %p311 = pneg %p38
      %s312 = smul.u32 2, %s20
      %p313 = scmp.lt.s32.totalorder %s312, 5
      %s314 = scalar_select %p313, %s312, 5
      %s315 = smul.addr %s314, 8
      %s316 = scalar_lea.vmem %s1, %s315
      %p317 = pneg %p67
      %p318 = pneg %p64
      %p319 = pneg %p88
      %p320 = pneg %p85
      %p321 = pneg %p109
      %p322 = pneg %p106
      %p323 = pneg %p130
      %p324 = pneg %p127
      %p325 = pneg %p151
      %p326 = pneg %p148
      %p327 = pneg %p172
      %p328 = pneg %p169
      %p329 = pneg %p193
      %p330 = pneg %p190
      %p331 = pneg %p214
      %p332 = pneg %p211
      %p333 = pneg %p240
      %p334 = pneg %p237
      %s335 = smul.u32 2, %s20
      %p336 = scmp.lt.s32.totalorder %s335, 5
      %s337 = scalar_select %p336, %s335, 5
      %s338 = smul.addr %s337, 8
      %s339 = scalar_lea.vmem %s9, %s338
      %s340 = smul.u32 2, %s20
      %p341 = scmp.lt.s32.totalorder %s340, 5
      %s342 = scalar_select %p341, %s340, 5
      %s343 = smul.addr %s342, 8
      %s344 = scalar_lea.vmem %s0, %s343
      %s345 = smul.u32 2, %s20
      %s346 = smul.u32 2, %s20
      %p347 = scmp.lt.s32.totalorder %s346, 5
      %s348 = scalar_select %p347, %s346, 5
      %s349 = smul.addr %s348, 8
      %s350 = scalar_lea.vmem %s1, %s349
      %s351 = smul.u32 2, %s20
      %s352 = smul.u32 2, %s20
      %p353 = scmp.lt.s32.totalorder %s352, 5
      %s354 = scalar_select %p353, %s352, 5
      %s355 = smul.addr %s354, 8
      %s356 = scalar_lea.vmem %s9, %s355
      %s357 = smul.u32 2, %s20
      %v358 = vld [vmem:[%s344] sm:$0xff]
      %v359 = vld [vmem:[%s344 + $0x8] sm:$0xff]
      %v360 = vld [vmem:[%s3] sm:$0xff]
      %v361 = vld [vmem:[%s3 + $0x8] sm:$0xff]
      %v362 = vld [vmem:[%s3 + $0x10] sm:$0xff]
      %v363 = vld [vmem:[%s3 + $0x18] sm:$0xff]
      %v364 = vld [vmem:[%s4] sm:$0x1]
      %v366 = vperm.slane %v364, 0
      %vm368 = vcmask 261120
      %v370 = vsel %vm368, %v358, 0
      %v373 = vsel %vm368, %v359, 0
      %375 = vmatpush.msra.mxu0 0.0
      %376 = vmatpush.msra.mxu0 0.0
      %377 = vmatpush.msra.mxu0 0.0
      %378 = vmatpush.msra.mxu0 0.0
      %379 = vmatpush.msra.mxu0 0.0
      %380 = vmatpush.msra.mxu0 0.0
      %381 = vmatpush.msra.mxu0 0.0
      %382 = vmatpush.msra.mxu0 0.0
      %383 = vmatpush.msra.mxu0 0.0
      %384 = vmatpush.msra.mxu0 0.0
      %385 = vmatpush.msra.mxu0 0.0
      %386 = vmatpush.msra.mxu0 0.0
      %387 = vmatpush.msra.mxu0 %v363
      %388 = vmatpush.msra.mxu0 %v362
      %389 = vmatpush.msra.mxu0 %v361
      %390 = vmatpush.msra.mxu0 %v360
      %391 = vmatmul.f32.gmra.mxu0 %v370
      %v392 = vpop.f32.mrf.mxu0
      %v393 = vadd.f32 %v366, %v392
      %394 = vmatmul.f32.gmra.mxu0 %v373
      %v395 = vpop.f32.mrf.mxu0
      %v396 = vadd.f32 %v366, %v395
      %397 = vdwg.mxu0
      %v398 = vtanh.pop %v393
      %v399 = vtanh.pop %v396
      %v400 = vld [vmem:[%s5] sm:$0xff]
      %v401 = vld [vmem:[%s5 + $0x8] sm:$0xff]
      %v402 = vld [vmem:[%s5 + $0x10] sm:$0xff]
      %v403 = vld [vmem:[%s5 + $0x18] sm:$0xff]
      %v404 = vld [vmem:[%s5 + $0x20] sm:$0xff]
      %v405 = vld [vmem:[%s5 + $0x28] sm:$0xff]
      %v406 = vld [vmem:[%s5 + $0x30] sm:$0xff]
      %v407 = vld [vmem:[%s5 + $0x38] sm:$0xff]
      %v408 = vld [vmem:[%s5 + $0x40] sm:$0xff]
      %v409 = vld [vmem:[%s5 + $0x48] sm:$0xff]
      %v410 = vld [vmem:[%s5 + $0x50] sm:$0xff]
      %v411 = vld [vmem:[%s5 + $0x58] sm:$0xff]
      %v412 = vld [vmem:[%s5 + $0x60] sm:$0xff]
      %v413 = vld [vmem:[%s5 + $0x68] sm:$0xff]
      %v414 = vld [vmem:[%s5 + $0x70] sm:$0xff]
      %v415 = vld [vmem:[%s5 + $0x78] sm:$0xff]
      %v416 = vld [vmem:[%s6] sm:$0x1]
      %v418 = vperm.slane %v416, 0
      %420 = vmatpush.msra.mxu0 %v415
      %421 = vmatpush.msra.mxu0 %v414
      %422 = vmatpush.msra.mxu0 %v413
      %423 = vmatpush.msra.mxu0 %v412
      %424 = vmatpush.msra.mxu0 %v411
      %425 = vmatpush.msra.mxu0 %v410
      %426 = vmatpush.msra.mxu0 %v409
      %427 = vmatpush.msra.mxu0 %v408
      %428 = vmatpush.msra.mxu0 %v407
      %429 = vmatpush.msra.mxu0 %v406
      %430 = vmatpush.msra.mxu0 %v405
      %431 = vmatpush.msra.mxu0 %v404
      %432 = vmatpush.msra.mxu0 %v403
      %433 = vmatpush.msra.mxu0 %v402
      %434 = vmatpush.msra.mxu0 %v401
      %435 = vmatpush.msra.mxu0 %v400
      %436 = vmatmul.f32.gmra.mxu0 %v398
      %v437 = vpop.f32.mrf.mxu0
      %v438 = vadd.f32 %v418, %v437
      %439 = vmatmul.f32.gmra.mxu0 %v399
      %v440 = vpop.f32.mrf.mxu0
      %v441 = vadd.f32 %v418, %v440
      %442 = vdwg.mxu0
      %v443 = vtanh.pop %v438
      %v444 = vtanh.pop %v441
      %v445 = vld [vmem:[%s7] sm:$0xff]
      %v446 = vld [vmem:[%s7 + $0x8] sm:$0xff]
      %v447 = vld [vmem:[%s7 + $0x10] sm:$0xff]
      %v448 = vld [vmem:[%s7 + $0x18] sm:$0xff]
      %v449 = vld [vmem:[%s7 + $0x20] sm:$0xff]
      %v450 = vld [vmem:[%s7 + $0x28] sm:$0xff]
      %v451 = vld [vmem:[%s7 + $0x30] sm:$0xff]
      %v452 = vld [vmem:[%s7 + $0x38] sm:$0xff]
      %v453 = vld [vmem:[%s7 + $0x40] sm:$0xff]
      %v454 = vld [vmem:[%s7 + $0x48] sm:$0xff]
      %v455 = vld [vmem:[%s7 + $0x50] sm:$0xff]
      %v456 = vld [vmem:[%s7 + $0x58] sm:$0xff]
      %v457 = vld [vmem:[%s7 + $0x60] sm:$0xff]
      %v458 = vld [vmem:[%s7 + $0x68] sm:$0xff]
      %v459 = vld [vmem:[%s7 + $0x70] sm:$0xff]
      %v460 = vld [vmem:[%s7 + $0x78] sm:$0xff]
      %v461 = vld [vmem:[%s8] sm:$0x1]
      %v463 = vperm.slane %v461, 0
      %465 = vmatpush.msra.mxu0 %v460
      %466 = vmatpush.msra.mxu0 %v459
      %467 = vmatpush.msra.mxu0 %v458
      %468 = vmatpush.msra.mxu0 %v457
      %469 = vmatpush.msra.mxu0 %v456
      %470 = vmatpush.msra.mxu0 %v455
      %471 = vmatpush.msra.mxu0 %v454
      %472 = vmatpush.msra.mxu0 %v453
      %473 = vmatpush.msra.mxu0 %v452
      %474 = vmatpush.msra.mxu0 %v451
      %475 = vmatpush.msra.mxu0 %v450
      %476 = vmatpush.msra.mxu0 %v449
      %477 = vmatpush.msra.mxu0 %v448
      %478 = vmatpush.msra.mxu0 %v447
      %479 = vmatpush.msra.mxu0 %v446
      %480 = vmatpush.msra.mxu0 %v445
      %481 = vmatmul.f32.gmra.mxu0 %v443
      %v482 = vpop.f32.mrf.mxu0
      %v483 = vadd.f32 %v463, %v482
      %484 = vmatmul.f32.gmra.mxu0 %v444
      %v485 = vpop.f32.mrf.mxu0
      %v486 = vadd.f32 %v463, %v485
      %487 = vdwg.mxu0
      %v488 = vld [vmem:[%s2] sm:$0x1]
      %v489 = vld [vmem:[%s350] sm:$0xff]
      %v490 = vld [vmem:[%s350 + $0x8] sm:$0xff]
      %v491 = vsub.f32 %v489, %v483
      %v492 = vsub.f32 %v490, %v486
      %v493 = vmul.f32 %v491, %v491
      %v494 = vmul.f32 %v492, %v492
      %v496 = vperm.slane %v488, 0
      %v498 = vmul.f32 %v493, %v496
      %v499 = vmul.f32 %v494, %v496
      %vm500 = vcmask 31744
      %v501 = vsel %vm500, %v498, 0.0
      %502 = vadd.xlane.f32.xlu0 %v501
      %v503 = vpop.xlane.xlu0 %502
      %v504 = vsel %vm500, %v499, 0.0
      %505 = vadd.xlane.f32.xlu0 %v504
      %v506 = vpop.xlane.xlu0 %505
      %v507 = vmul.f32 %v503, 0.5
      %v508 = vmul.f32 %v506, 0.5
      %v509 = vsub.f32 %v496, %v507
      %v510 = vsub.f32 %v496, %v508
      %513 = vrot.lane.b32.xlu0 %v509, 124
      %v514 = vpop.permute.xlu0 %513
      %515 = vrot.lane.b32.xlu0 %v510, 124
      %v516 = vpop.permute.xlu0 %515
      %521 = vrot.lane.b32.xlu0 %v483, 125
      %v522 = vpop.permute.xlu0 %521
      %523 = vrot.lane.b32.xlu0 %v486, 125
      %v524 = vpop.permute.xlu0 %523
      %vm527 = vcmask 7168
      %v528 = vsel %vm527, %v514, %v522
      %v529 = vsel %vm527, %v516, %v524
      %vm530 = vcmask 15360
      %531 = vst.msk [vmem:[%s356] sm:$0xff] %vm530, %v528
      %532 = vst.msk [vmem:[%s356 + $0x8] sm:$0xff] %vm530, %v529
      %s533 = smul.u32 2, %s20
      %p534 = scmp.lt.s32.totalorder %s533, 5
      %s535 = scalar_select %p534, %s533, 5
      %s536 = smul.addr %s535, 8
      %s537 = scalar_lea.vmem %s9, %s536
      // Predicated region
      $region57: #{_evaluate_impl.1} parent=55 // pred_check
        %p538 = pneg %p237
      $region58: #{_evaluate_impl.1} parent=55 // pred_check_branch
        %540 = sbr.rel (%p538) target = $region60
      $region59: #{_evaluate_impl.1} parent=55 // pred_region
        %s541 = smul.u32 2, %s20
      $region60: #{_evaluate_impl.1} parent=55 // pred_fallthru
        _
    $region56: #{_evaluate_impl.1} parent=5 // pred_fallthru
      _
    %p542 = scmp.le.s32.totalorder 2, %s15
    // Predicated region
    $region61: #{_evaluate_impl.1} parent=5 // pred_check
      %p543 = pneg %p542
    $region62: #{_evaluate_impl.1} parent=5 // pred_check_branch
      %545 = sbr.rel (%p543) target = $region64
    $region63: #{_evaluate_impl.1} parent=5 // pred_region
      %s546 = ssub.s32 %s15, 2
      // Predicated region
      $region65: #{_evaluate_impl.1} parent=63 // pred_check
        %p547 = pneg %p243
      $region66: #{_evaluate_impl.1} parent=63 // pred_check_branch
        %549 = sbr.rel (%p547) target = $region68
      $region67: #{_evaluate_impl.1} parent=63 // pred_region
        %s550 = smul.u32 2, %s21
        %p551 = scmp.lt.s32.totalorder %s550, 5
        %s552 = scalar_select %p551, %s550, 5
        %s553 = smul.addr %s552, 8
        %s554 = scalar_lea.vmem %s9, %s553
      $region68: #{_evaluate_impl.1} parent=63 // pred_fallthru
        _
    $region64: #{_evaluate_impl.1} parent=5 // pred_fallthru
      _
  $region6: #{_evaluate_impl.1} parent=0 // loop_footer
    %s19 = sadd.s32 1, %s15
  $region7: #{_evaluate_impl.1} parent=0 // loop_footer_branch
    %14 = sbr.rel target = $region3
  $region8: #{_evaluate_impl.1} parent=0 // loop_exit
    _

</llo_original>
